<compile_context>
chip_gen: v6e
topology: v6e:2x2x1
jax: 0.10.0
libtpu: 0.0.40
codegen_flags: <defaults>
</compile_context>

<pallas_src>
import functools

import jax
import jax.numpy as jnp
from jax import lax
from jax.experimental import pallas as pl
from jax.experimental.pallas import tpu as pltpu


# -----------------------------------------------------------------------------
# Helpers
# -----------------------------------------------------------------------------
def _round_up(a: int, b: int) -> int:
    return ((a + b - 1) // b) * b


def _vmem_capacity_bytes() -> int:
    """Physical VMEM capacity of the current TPU generation (bytes)."""
    try:
        info = pltpu.get_tpu_info()
        cap = getattr(info, "vmem_capacity_bytes", None)
        if cap:
            return int(cap)
    except Exception:
        pass
    return 64 * 1024 * 1024   # conservative fallback (v7x per-core size)


def prepare_weight(weight, mxu_dtype=jnp.bfloat16):
    """Pre-transpose (and optionally down-cast) the nn.Linear weight.

    Call this ONCE at init time and pass the result as `weight_t=` so the
    transpose / bf16 cast is not re-materialized in HBM on every forward.
    """
    w_t = jnp.asarray(weight).T                      # (D, 3D)
    if mxu_dtype is not None and w_t.dtype != jnp.dtype(mxu_dtype):
        w_t = w_t.astype(mxu_dtype)
    return w_t


def _layer_norm_modulate(x_f32, shift, scale, eps):
    """One-pass LayerNorm (no affine) + adaLN modulation, all in f32."""
    mean = jnp.mean(x_f32, axis=-1, keepdims=True)
    meansq = jnp.mean(x_f32 * x_f32, axis=-1, keepdims=True)
    var = jnp.maximum(meansq - mean * mean, 0.0)
    x_norm = (x_f32 - mean) * lax.rsqrt(var + eps)
    return x_norm * (1.0 + scale) + shift


# -----------------------------------------------------------------------------
# Fused per-token kernels (emb has the same shape as x).
# -----------------------------------------------------------------------------
def _fused_resident_kernel(x_ref, emb_ref, w_ref, b_ref, out_ref, gate_ref,
                           *, eps: float):
    """Weight-resident variant: grid = (row tiles,), single K step."""
    D = out_ref.shape[-1]

    # SiLU in f32 on VPU/EUP; matmul operands in the weight's stored dtype
    # (bf16 by default) with f32 accumulation on the MXU.
    e = emb_ref[...].astype(jnp.float32)
    silu = e * jax.nn.sigmoid(e)
    proj = jnp.dot(silu.astype(w_ref.dtype), w_ref[...],
                   preferred_element_type=jnp.float32)
    proj = proj + b_ref[...].astype(jnp.float32)          # (tm, 3D)

    shift = proj[:, 0 * D:1 * D]
    scale = proj[:, 1 * D:2 * D]
    gate = proj[:, 2 * D:3 * D]

    x = x_ref[...].astype(jnp.float32)
    out_ref[...] = _layer_norm_modulate(x, shift, scale, eps).astype(out_ref.dtype)
    gate_ref[...] = gate.astype(gate_ref.dtype)


def _fused_ktiled_kernel(x_ref, emb_ref, w_ref, b_ref, out_ref, gate_ref,
                         acc_ref, *, eps: float):
    """K-tiled variant: grid = (row tiles, K tiles); (tm,3D) f32 accumulator."""
    D = out_ref.shape[-1]
    k = pl.program_id(1)

    @pl.when(k == 0)
    def _init():
        # Fold the bias into the accumulator init (saves a full (tm,3D) VPU
        # pass in the finalize epilogue, which sits on the critical path).
        acc_ref[...] = jnp.broadcast_to(
            b_ref[...].astype(jnp.float32), acc_ref.shape)

    e = emb_ref[...].astype(jnp.float32)
    silu = e * jax.nn.sigmoid(e)
    acc_ref[...] += jnp.dot(silu.astype(w_ref.dtype), w_ref[...],
                            preferred_element_type=jnp.float32)

    @pl.when(k == pl.num_programs(1) - 1)
    def _finalize():
        proj = acc_ref[...]                                # (tm, 3D), bias included
        shift = proj[:, 0 * D:1 * D]
        scale = proj[:, 1 * D:2 * D]
        gate = proj[:, 2 * D:3 * D]

        x = x_ref[...].astype(jnp.float32)
        out_ref[...] = _layer_norm_modulate(x, shift, scale, eps).astype(out_ref.dtype)
        gate_ref[...] = gate.astype(gate_ref.dtype)


def _select_fused_config(M, D, xb, eb, ob, wb, budget, tm_hint, tk_req):
    """Pick (tm, tk).  tk == D means the weight-resident single-K-step kernel."""
    tm_cap = max(8, min(tm_hint, _round_up(M, 8)))
    tm_cands = [t for t in (1024, 512, 256, 128, 64, 32, 16, 8) if t <= tm_cap]
    if not tm_cands:
        tm_cands = [8]

    def resident_bytes(tm):
        return (2 * tm * D * (xb + eb)          # x + emb tiles (double-buffered)
                + 2 * D * 3 * D * wb            # weight (counted with 2 buffers)
                + 2 * 3 * D * 4                 # bias
                + 2 * tm * D * 2 * ob           # out + gate (double-buffered)
                + tm * 3 * D * 4                # proj f32 temporary
                + 4 * tm * D * 4)               # LN temporaries / slack

    def ktiled_bytes(tm, tk):
        return (2 * tm * D * xb + 2 * tm * tk * eb
                + 2 * tk * 3 * D * wb + 2 * 3 * D * 4
                + 2 * tm * D * 2 * ob
                + tm * 3 * D * 4                # accumulator scratch
                + 4 * tm * D * 4)

    # Legal K tiles: multiples of 128 (lane dim; also covers bf16 sublane
    # packing), dividing D, capped at 512.
    tk_cands = [t for t in range(D - 128, 0, -128) if D % t == 0 and t <= 512]

    if tk_req is not None and tk_req < D and D % tk_req == 0 and tk_req % 128 == 0:
        for tm in tm_cands:
            if ktiled_bytes(tm, tk_req) <= budget:
                return tm, tk_req
        return tm_cands[-1], tk_req

    # Prefer weight residency (v5e/v6e; small D on v7x): weight streamed once.
    for tm in tm_cands:
        if resident_bytes(tm) <= budget:
            return tm, D

    # Weight too large to be resident (e.g. v7x, large D): K-tile with the
    # largest row tile that fits (maximizes flops per streamed weight byte).
    for tm in tm_cands:
        for tk in tk_cands:
            if ktiled_bytes(tm, tk) <= budget:
                return tm, tk

    return tm_cands[-1], (tk_cands[-1] if tk_cands else D)


def _fused_call(x2, e2, w_t, b2, *, eps, tm, tk, vmem_limit):
    M, D = x2.shape
    Mp = _round_up(M, tm)
    if Mp != M:
        pad = Mp - M
        x2 = jnp.pad(x2, ((0, pad), (0, 0)))
        e2 = jnp.pad(e2, ((0, pad), (0, 0)))

    out_shapes = (jax.ShapeDtypeStruct((Mp, D), x2.dtype),
                  jax.ShapeDtypeStruct((Mp, D), x2.dtype))

    if tk == D:
        kernel = functools.partial(_fused_resident_kernel, eps=eps)
        out2, gate2 = pl.pallas_call(
            kernel,
            out_shape=out_shapes,
            grid_spec=pltpu.PrefetchScalarGridSpec(
                num_scalar_prefetch=0,
                grid=(Mp // tm,),
                in_specs=[
                    pl.BlockSpec((tm, D), lambda i: (i, 0)),       # x rows
                    pl.BlockSpec((tm, D), lambda i: (i, 0)),       # emb rows
                    pl.BlockSpec((D, 3 * D), lambda i: (0, 0)),    # resident weight
                    pl.BlockSpec((1, 3 * D), lambda i: (0, 0)),    # bias
                ],
                out_specs=[
                    pl.BlockSpec((tm, D), lambda i: (i, 0)),       # modulated x
                    pl.BlockSpec((tm, D), lambda i: (i, 0)),       # gate_msa
                ],
            ),
            compiler_params=pltpu.CompilerParams(
                dimension_semantics=("parallel",),
                vmem_limit_bytes=vmem_limit),
        )(x2, e2, w_t, b2)
    else:
        kernel = functools.partial(_fused_ktiled_kernel, eps=eps)
        out2, gate2 = pl.pallas_call(
            kernel,
            out_shape=out_shapes,
            grid_spec=pltpu.PrefetchScalarGridSpec(
                num_scalar_prefetch=0,
                grid=(Mp // tm, D // tk),
                in_specs=[
                    pl.BlockSpec((tm, D), lambda i, k: (i, 0)),       # x rows
                    pl.BlockSpec((tm, tk), lambda i, k: (i, k)),      # emb K-slice
                    pl.BlockSpec((tk, 3 * D), lambda i, k: (k, 0)),   # weight K-slab
                    pl.BlockSpec((1, 3 * D), lambda i, k: (0, 0)),    # bias
                ],
                out_specs=[
                    pl.BlockSpec((tm, D), lambda i, k: (i, 0)),
                    pl.BlockSpec((tm, D), lambda i, k: (i, 0)),
                ],
                scratch_shapes=[pltpu.VMEM((tm, 3 * D), jnp.float32)],
            ),
            compiler_params=pltpu.CompilerParams(
                dimension_semantics=("parallel", "arbitrary"),
                vmem_limit_bytes=vmem_limit),
        )(x2, e2, w_t, b2)
    return out2[:M], gate2[:M]


# -----------------------------------------------------------------------------
# Per-sample path: LayerNorm + modulation only (projection hoisted to XLA).
# -----------------------------------------------------------------------------
def _modulate_kernel(x_ref, proj_ref, out_ref, *, eps: float):
    D = out_ref.shape[-1]
    proj = proj_ref[...].astype(jnp.float32)               # (1, 3D)
    shift = proj[:, 0 * D:1 * D][:, None, :]                # (1, 1, D)
    scale = proj[:, 1 * D:2 * D][:, None, :]

    x = x_ref[...].astype(jnp.float32)                      # (1, ts, D)
    out_ref[...] = _layer_norm_modulate(x, shift, scale, eps).astype(out_ref.dtype)


def _modulate_call(x3, proj, *, eps, ts, vmem_limit, budget):
    B, S, D = x3.shape
    xb = jnp.dtype(x3.dtype).itemsize

    ts = min(ts, S)
    if ts < S:
        ts = max(8, (ts // 8) * 8)
    # Keep (in + out) double-buffered tiles plus f32 temporaries under budget.
    while ts > 8 and (4 * ts * D * xb + 3 * ts * D * 4) > budget:
        ts = max(8, ts // 2)

    Sp = _round_up(S, ts) if ts < S else S
    xp = x3 if Sp == S else jnp.pad(x3, ((0, 0), (0, Sp - S), (0, 0)))

    kernel = functools.partial(_modulate_kernel, eps=eps)
    out = pl.pallas_call(
        kernel,
        out_shape=jax.ShapeDtypeStruct((B, Sp, D), x3.dtype),
        grid_spec=pltpu.PrefetchScalarGridSpec(
            num_scalar_prefetch=0,
            grid=(B, Sp // ts),
            in_specs=[
                pl.BlockSpec((1, ts, D), lambda b, s: (b, s, 0)),   # x tile
                pl.BlockSpec((1, 3 * D), lambda b, s: (b, 0)),      # per-batch proj
            ],
            out_specs=pl.BlockSpec((1, ts, D), lambda b, s: (b, s, 0)),
        ),
        compiler_params=pltpu.CompilerParams(
            dimension_semantics=("parallel", "parallel"),
            vmem_limit_bytes=vmem_limit),
    )(xp, proj)
    return out if Sp == S else out[:, :S]


# -----------------------------------------------------------------------------
# Public wrapper
# -----------------------------------------------------------------------------
def ada_layer_norm_zero_single(x, emb, weight, bias, *, eps=1e-6,
                               weight_t=None, mxu_dtype=jnp.bfloat16,
                               tm=512, tk=None, ts=512):
    """AdaLayerNormZeroSingle forward.

    x: [..., D]; emb: same shape as x (per-token conditioning) or
    [B, D] / [B, 1, D] (per-sample, the diffusers contract).
    weight: [3D, D] (torch nn.Linear layout), bias: [3D].
    weight_t: optional cached prepare_weight(weight, mxu_dtype) -> (D, 3D);
    pass it to avoid re-transposing / re-casting the weight every forward.
    """
    D = x.shape[-1]
    assert weight.shape == (3 * D, D)
    b2 = bias.reshape(1, 3 * D)

    cap = _vmem_capacity_bytes()
    budget = int(cap * 0.85)        # headroom for compiler temporaries
    vmem_limit = int(cap * 0.92)

    if emb.shape == x.shape:
        # ---- per-token conditioning: fused SiLU + Linear + LayerNorm ----
        M = 1
        for d in x.shape[:-1]:
            M *= d
        x2 = x.reshape(M, D)
        e2 = emb.reshape(M, D)
        w_t = prepare_weight(weight, mxu_dtype) if weight_t is None else weight_t
        assert w_t.shape == (D, 3 * D)

        xb = jnp.dtype(x.dtype).itemsize
        eb = jnp.dtype(emb.dtype).itemsize
        ob = jnp.dtype(x.dtype).itemsize
        wb = jnp.dtype(w_t.dtype).itemsize
        tm_sel, tk_sel = _select_fused_config(M, D, xb, eb, ob, wb,
                                              budget, tm, tk)
        out2, gate2 = _fused_call(x2, e2, w_t, b2, eps=eps,
                                  tm=tm_sel, tk=tk_sel, vmem_limit=vmem_limit)
        return out2.reshape(x.shape), gate2.reshape(x.shape)

    # ---- per-sample conditioning: hoist SiLU+Linear out of the token loop ----
    assert x.ndim == 3, "per-sample path expects x of shape [B, S, D]"
    B, S, _ = x.shape
    assert emb.shape in ((B, D), (B, 1, D)), f"unsupported emb shape {emb.shape}"

    e2 = emb.reshape(B, D).astype(jnp.float32)
    silu = e2 * jax.nn.sigmoid(e2)
    # Tiny (B, 3D) projection — plain XLA matmul in the weight's stored dtype
    # with f32 accumulation (weight is read exactly once either way).
    proj = lax.dot_general(silu.astype(weight.dtype), weight,
                           dimension_numbers=(((1,), (1,)), ((), ())),
                           preferred_element_type=jnp.float32)
    proj = proj + bias.astype(jnp.float32)[None, :]            # (B, 3D)

    gate = proj[:, 2 * D:3 * D].astype(x.dtype).reshape(emb.shape)
    out = _modulate_call(x, proj, eps=eps, ts=ts,
                         vmem_limit=vmem_limit, budget=budget)
    return out, gate


# -----------------------------------------------------------------------------
# Pure-JAX reference matching the PyTorch forward (for testing).
# -----------------------------------------------------------------------------
def _reference(x, emb, weight, bias, eps=1e-6):
    e = emb.astype(jnp.float32)
    silu = e * jax.nn.sigmoid(e)
    proj = jnp.einsum('...d,ed->...e', silu, weight.astype(jnp.float32))
    proj = proj + bias.astype(jnp.float32)
    D = x.shape[-1]
    shift, scale, gate = proj[..., :D], proj[..., D:2 * D], proj[..., 2 * D:]
    xf = x.astype(jnp.float32)
    mean = jnp.mean(xf, axis=-1, keepdims=True)
    var = jnp.mean((xf - mean) ** 2, axis=-1, keepdims=True)
    xn = (xf - mean) * lax.rsqrt(var + eps)
    out = (xn * (1.0 + scale) + shift).astype(x.dtype)
    return out, gate.astype(x.dtype)


if __name__ == "__main__":
    # Small, lane-aligned shapes (D multiple of 128).
    B, S, D = 2, 8, 128
    key = jax.random.PRNGKey(0)
    kx, ke, kw, kb, ke2, kx2, ke3 = jax.random.split(key, 7)

    x = jax.random.normal(kx, (B, S, D), dtype=jnp.float32)
    weight = jax.random.normal(kw, (3 * D, D), dtype=jnp.float32) * (D ** -0.5)
    bias = jax.random.normal(kb, (3 * D,), dtype=jnp.float32) * 0.02
    emb_tok = jax.random.normal(ke, (B, S, D), dtype=jnp.float32)

    ref_out, ref_gate = _reference(x, emb_tok, weight, bias)

    # --- 1a: per-token, bf16 MXU default, cached pre-transposed weight -------
    w_t_bf16 = prepare_weight(weight, jnp.bfloat16)
    out, gate = ada_layer_norm_zero_single(x, emb_tok, weight, bias,
                                           weight_t=w_t_bf16)
    jax.block_until_ready((out, gate))
    assert out.shape == ref_out.shape and gate.shape == ref_gate.shape
    assert jnp.allclose(out, ref_out, atol=5e-2, rtol=5e-2)
    assert jnp.allclose(gate, ref_gate, atol=5e-2, rtol=5e-2)

    # --- 1b: per-token, f32 MXU (tight structural check vs reference) --------
    out32, gate32 = ada_layer_norm_zero_single(x, emb_tok, weight, bias,
                                               mxu_dtype=None)
    jax.block_until_ready((out32, gate32))
    assert jnp.allclose(out32, ref_out, atol=1e-4, rtol=1e-4)
    assert jnp.allclose(gate32, ref_gate, atol=1e-4, rtol=1e-4)

    # --- 1c: forced K-tiled accumulation kernel (tk < D), f32 MXU ------------
    D2 = 256
    x_b = jax.random.normal(kx2, (B, 2 * S, D2), dtype=jnp.float32)
    emb_b = jax.random.normal(ke3, (B, 2 * S, D2), dtype=jnp.float32)
    w_b = jax.random.normal(kw, (3 * D2, D2), dtype=jnp.float32) * (D2 ** -0.5)
    b_b = jax.random.normal(kb, (3 * D2,), dtype=jnp.float32) * 0.02
    ref_out_b, ref_gate_b = _reference(x_b, emb_b, w_b, b_b)
    out_b, gate_b = ada_layer_norm_zero_single(x_b, emb_b, w_b, b_b,
                                               mxu_dtype=None, tk=128)
    jax.block_until_ready((out_b, gate_b))
    assert jnp.allclose(out_b, ref_out_b, atol=1e-4, rtol=1e-4)
    assert jnp.allclose(gate_b, ref_gate_b, atol=1e-4, rtol=1e-4)

    # --- 2: per-sample conditioning (emb is [B, 1, D]) ------------------------
    emb_smp = jax.random.normal(ke2, (B, 1, D), dtype=jnp.float32)
    ref_out2, ref_gate2 = _reference(x, emb_smp, weight, bias)
    out2, gate2 = ada_layer_norm_zero_single(x, emb_smp, weight, bias)
    jax.block_until_ready((out2, gate2))
    assert out2.shape == ref_out2.shape and gate2.shape == ref_gate2.shape
    assert jnp.allclose(out2, ref_out2, atol=1e-4, rtol=1e-4)
    assert jnp.allclose(gate2, ref_gate2, atol=1e-4, rtol=1e-4)

    print("KERNEL_OK")
</pallas_src>

<mosaic_0001>
module attributes {stable_mosaic.version = 11 : i64} {
  func.func @_fused_resident_kernel(%arg0: i32, %arg1: memref<16x128xf32, #tpu.memory_space<vmem>>, %arg2: memref<16x128xf32, #tpu.memory_space<vmem>>, %arg3: memref<128x384xbf16, #tpu.memory_space<vmem>>, %arg4: memref<1x384xf32, #tpu.memory_space<vmem>>, %arg5: memref<16x128xf32, #tpu.memory_space<vmem>>, %arg6: memref<16x128xf32, #tpu.memory_space<vmem>>) attributes {dimension_semantics = [#tpu.dimension_semantics<parallel>], iteration_bounds = array<i64: 1>, scalar_prefetch = 0 : i64, scratch_operands = 0 : i64, tpu.core_type = #tpu.core_type<tc>, window_params = [{transform_indices = @transform_0, window_bounds = array<i64: 16, 128>}, {transform_indices = @transform_1, window_bounds = array<i64: 16, 128>}, {pipeline_mode = #tpu.pipeline_mode<synchronous>, transform_indices = @transform_2, window_bounds = array<i64: 128, 384>}, {pipeline_mode = #tpu.pipeline_mode<synchronous>, transform_indices = @transform_3, window_bounds = array<i64: 1, 384>}, {transform_indices = @transform_4, window_bounds = array<i64: 16, 128>}, {transform_indices = @transform_5, window_bounds = array<i64: 16, 128>}]} {
    %c0 = arith.constant 0 : index
    %c0_0 = arith.constant 0 : index
    %0 = vector.load %arg2[%c0, %c0_0] : memref<16x128xf32, #tpu.memory_space<vmem>>, vector<16x128xf32>
    %1 = arith.negf %0 : vector<16x128xf32>
    %2 = math.exp %1 : vector<16x128xf32>
    %cst = arith.constant 1.000000e+00 : f32
    %3 = vector.broadcast %cst : f32 to vector<16x128xf32>
    %4 = arith.addf %3, %2 : vector<16x128xf32>
    %5 = arith.divf %3, %4 : vector<16x128xf32>
    %6 = arith.mulf %0, %5 : vector<16x128xf32>
    %7 = arith.truncf %6 : vector<16x128xf32> to vector<16x128xbf16>
    %c0_1 = arith.constant 0 : index
    %c0_2 = arith.constant 0 : index
    %8 = vector.load %arg3[%c0_1, %c0_2] : memref<128x384xbf16, #tpu.memory_space<vmem>>, vector<128x384xbf16>
    %cst_3 = arith.constant dense<0.000000e+00> : vector<16x384xf32>
    %9 = tpu.matmul %7, %8, %cst_3 {dimension_numbers = #tpu.dot_dimension_numbers<[1], [0], [0], [1], [0, 0, 1, 1], [], []>} : vector<16x128xbf16>, vector<128x384xbf16>, vector<16x384xf32> -> vector<16x384xf32>
    %c0_4 = arith.constant 0 : index
    %c0_5 = arith.constant 0 : index
    %10 = vector.load %arg4[%c0_4, %c0_5] : memref<1x384xf32, #tpu.memory_space<vmem>>, vector<1x384xf32>
    %11 = vector.broadcast %10 : vector<1x384xf32> to vector<16x384xf32>
    %12 = arith.addf %9, %11 : vector<16x384xf32>
    %13 = vector.extract_strided_slice %12 {offsets = [0, 0], sizes = [16, 128], strides = [1, 1]} : vector<16x384xf32> to vector<16x128xf32>
    %14 = vector.extract_strided_slice %12 {offsets = [0, 128], sizes = [16, 128], strides = [1, 1]} : vector<16x384xf32> to vector<16x128xf32>
    %15 = vector.extract_strided_slice %12 {offsets = [0, 256], sizes = [16, 128], strides = [1, 1]} : vector<16x384xf32> to vector<16x128xf32>
    %c0_6 = arith.constant 0 : index
    %c0_7 = arith.constant 0 : index
    %16 = vector.load %arg1[%c0_6, %c0_7] : memref<16x128xf32, #tpu.memory_space<vmem>>, vector<16x128xf32>
    %cst_8 = arith.constant dense<0.000000e+00> : vector<16xf32>
    %17 = vector.multi_reduction <add>, %16, %cst_8 [1] : vector<16x128xf32> to vector<16xf32>
    %18 = vector.shape_cast %17 : vector<16xf32> to vector<16x1xf32>
    %cst_9 = arith.constant 1.280000e+02 : f32
    %19 = vector.broadcast %cst_9 : f32 to vector<16x1xf32>
    %20 = arith.divf %18, %19 : vector<16x1xf32>
    %21 = arith.mulf %16, %16 : vector<16x128xf32>
    %cst_10 = arith.constant dense<0.000000e+00> : vector<16xf32>
    %22 = vector.multi_reduction <add>, %21, %cst_10 [1] : vector<16x128xf32> to vector<16xf32>
    %23 = vector.shape_cast %22 : vector<16xf32> to vector<16x1xf32>
    %cst_11 = arith.constant 1.280000e+02 : f32
    %24 = vector.broadcast %cst_11 : f32 to vector<16x1xf32>
    %25 = arith.divf %23, %24 : vector<16x1xf32>
    %26 = arith.mulf %20, %20 : vector<16x1xf32>
    %27 = arith.subf %25, %26 : vector<16x1xf32>
    %cst_12 = arith.constant 0.000000e+00 : f32
    %28 = vector.broadcast %cst_12 : f32 to vector<16x1xf32>
    %29 = arith.maximumf %27, %28 : vector<16x1xf32>
    %30 = vector.broadcast %20 : vector<16x1xf32> to vector<16x128xf32>
    %31 = arith.subf %16, %30 : vector<16x128xf32>
    %cst_13 = arith.constant 9.99999997E-7 : f32
    %32 = vector.broadcast %cst_13 : f32 to vector<16x1xf32>
    %33 = arith.addf %29, %32 : vector<16x1xf32>
    %34 = math.rsqrt %33 : vector<16x1xf32>
    %35 = vector.broadcast %34 : vector<16x1xf32> to vector<16x128xf32>
    %36 = arith.mulf %31, %35 : vector<16x128xf32>
    %cst_14 = arith.constant 1.000000e+00 : f32
    %37 = vector.broadcast %cst_14 : f32 to vector<16x128xf32>
    %38 = arith.addf %37, %14 : vector<16x128xf32>
    %39 = arith.mulf %36, %38 : vector<16x128xf32>
    %40 = arith.addf %39, %13 : vector<16x128xf32>
    %c0_15 = arith.constant 0 : index
    %c0_16 = arith.constant 0 : index
    %41 = vector.load %arg5[%c0_15, %c0_16] : memref<16x128xf32, #tpu.memory_space<vmem>>, vector<16x128xf32>
    tpu.vector_store %arg5[%c0_15, %c0_16], %40 {strides = array<i32>} : memref<16x128xf32, #tpu.memory_space<vmem>>, vector<16x128xf32>,
    %c0_17 = arith.constant 0 : index
    %c0_18 = arith.constant 0 : index
    %42 = vector.load %arg6[%c0_17, %c0_18] : memref<16x128xf32, #tpu.memory_space<vmem>>, vector<16x128xf32>
    tpu.vector_store %arg6[%c0_17, %c0_18], %15 {strides = array<i32>} : memref<16x128xf32, #tpu.memory_space<vmem>>, vector<16x128xf32>,
    return
  }
  func.func @transform_0(%arg0: i32) -> (i32, i32) {
    %c0_i32 = arith.constant 0 : i32
    %c0_i32_0 = arith.constant 0 : i32
    return %arg0, %c0_i32 : i32, i32
  }
  func.func @transform_1(%arg0: i32) -> (i32, i32) {
    %c0_i32 = arith.constant 0 : i32
    %c0_i32_0 = arith.constant 0 : i32
    return %arg0, %c0_i32 : i32, i32
  }
  func.func @transform_2(%arg0: i32) -> (i32, i32) {
    %c0_i32 = arith.constant 0 : i32
    %c0_i32_0 = arith.constant 0 : i32
    %c0_i32_1 = arith.constant 0 : i32
    return %c0_i32, %c0_i32_0 : i32, i32
  }
  func.func @transform_3(%arg0: i32) -> (i32, i32) {
    %c0_i32 = arith.constant 0 : i32
    %c0_i32_0 = arith.constant 0 : i32
    %c0_i32_1 = arith.constant 0 : i32
    return %c0_i32, %c0_i32_0 : i32, i32
  }
  func.func @transform_4(%arg0: i32) -> (i32, i32) {
    %c0_i32 = arith.constant 0 : i32
    %c0_i32_0 = arith.constant 0 : i32
    return %arg0, %c0_i32 : i32, i32
  }
  func.func @transform_5(%arg0: i32) -> (i32, i32) {
    %c0_i32 = arith.constant 0 : i32
    %c0_i32_0 = arith.constant 0 : i32
    return %arg0, %c0_i32 : i32, i32
  }
}

</mosaic_0001>

<llo_original>
// kernel: tpu_custom_call.1
$region0: #{tpu_custom_call.1}
  #allocation0 [shape = 'u32[]', space=smem, size = 0x4, offset = 0x4, fixed_abs, tag = 'smem constant byte address 0x4 - core index']
  #allocation1 [shape = 'u32[144,128]{1,0:T(1,128)}', space=vmem, size = 0x12000, scoped, tag = 'internal scratch']
  %s0 = inlined_call_operand.hbm [shape: f32[16,128], index: 0, kind: input, shape index: {}]
  %s1 = inlined_call_operand.hbm [shape: f32[16,128], index: 1, kind: input, shape index: {}]
  %s2 = inlined_call_operand.hbm [shape: bf16[128,384], index: 2, kind: input, shape index: {}]
  %s3 = inlined_call_operand.vmem [shape: f32[1,384], index: 3, kind: input, shape index: {}]
  %s4 = inlined_call_operand.hbm [shape: f32[16,128], index: 4, kind: output, shape index: {0}]
  %s5 = inlined_call_operand.hbm [shape: f32[16,128], index: 5, kind: output, shape index: {1}]
  %6 = xla_tuple %s4, %s5
  %s7 = sld [smem:[#allocation0]]
  $region46: #{tpu_custom_call.1} parent=0
    _
  %s9 = ssub.s32 1, %s7
  %s10 = scalar_select 0, %s9, %s7
  $region1: #{tpu_custom_call.1} parent=0
    #allocation2 [shape = 'u8[8192]{0}', space=vmem, size = 0x2000, scoped, tag = 'input window, operand 0, single buffered']
    #allocation3 [shape = 's32[1]{0}', space=sflag, size = 0x4, scoped, tag = 'scoped memory for tpu_custom_call.1']
    #allocation4 [shape = 's32[1]{0}', space=sflag, size = 0x4, scoped, tag = 'scoped memory for tpu_custom_call.1']
    #allocation5 [shape = 'u8[8192]{0}', space=vmem, size = 0x2000, scoped, tag = 'input window, operand 1, single buffered']
    #allocation6 [shape = 's32[1]{0}', space=sflag, size = 0x4, scoped, tag = 'scoped memory for tpu_custom_call.1']
    #allocation7 [shape = 'u8[98304]{0}', space=vmem, size = 0x18000, scoped, tag = 'input window, operand 2, single buffered']
    #allocation8 [shape = 'u8[8192]{0}', space=vmem, size = 0x2000, scoped, tag = 'output window, operand 0, single buffered']
    #allocation9 [shape = 'u8[8192]{0}', space=vmem, size = 0x2000, scoped, tag = 'output window, operand 1, single buffered']
    #allocation10 [shape = 's32[1]{0}', space=sflag, size = 0x4, scoped, tag = 'scoped memory for tpu_custom_call.1']
    %11 = vsyncpa [#allocation3], 0
    %12 = vsyncpa [#allocation6], 0
    %13 = vsyncpa [#allocation4], 0
    %14 = vsyncpa [#allocation10], 0
    // Predicated region
    $region2: #{tpu_custom_call.1} parent=1 // pred_check
      _
    $region3: #{tpu_custom_call.1} parent=1 // pred_check_branch
      %16 = sbr.rel (0) target = $region5
    $region4: #{tpu_custom_call.1} parent=1 // pred_region
      %s18 = ssub.s32 256, 256
      %19 = vsyncadd [#allocation3], %s18
      %s20 = sshll.u32 [#allocation2], 4
      %s21 = int_to_ptr.vmem [resolvable:$true] %s20
      %26 = dma.hbm_to_vmem [thread:$0]  %s0, 256, %s21, [#allocation3], 128, 128, 8
    $region5: #{tpu_custom_call.1} parent=1 // pred_fallthru
      _
    // Predicated region
    $region6: #{tpu_custom_call.1} parent=1 // pred_check
      _
    $region7: #{tpu_custom_call.1} parent=1 // pred_check_branch
      %28 = sbr.rel (0) target = $region9
    $region8: #{tpu_custom_call.1} parent=1 // pred_region
      %s30 = ssub.s32 256, 256
      %31 = vsyncadd [#allocation6], %s30
      %s32 = sshll.u32 [#allocation5], 4
      %s33 = int_to_ptr.vmem [resolvable:$true] %s32
      %38 = dma.hbm_to_vmem [thread:$0]  %s1, 256, %s33, [#allocation6], 128, 128, 8
    $region9: #{tpu_custom_call.1} parent=1 // pred_fallthru
      _
    // Predicated region
    $region10: #{tpu_custom_call.1} parent=1 // pred_check
      _
    $region11: #{tpu_custom_call.1} parent=1 // pred_check_branch
      %40 = sbr.rel (0) target = $region13
    $region12: #{tpu_custom_call.1} parent=1 // pred_region
      %s42 = ssub.s32 3072, 3072
      %43 = vsyncadd [#allocation6], %s42
      %s44 = sshll.u32 [#allocation7], 4
      %s45 = int_to_ptr.vmem [resolvable:$true] %s44
      %50 = dma.hbm_to_vmem [thread:$0]  %s2, 3072, %s45, [#allocation6], 192, 192, 12
    $region13: #{tpu_custom_call.1} parent=1 // pred_fallthru
      _
    // Predicated region
    $region14: #{tpu_custom_call.1} parent=1 // pred_check
      _
    $region15: #{tpu_custom_call.1} parent=1 // pred_check_branch
      %52 = sbr.rel (0) target = $region17
    $region16: #{tpu_custom_call.1} parent=1 // pred_region
      _
    $region17: #{tpu_custom_call.1} parent=1 // pred_fallthru
      _
    // Predicated region
    $region18: #{tpu_custom_call.1} parent=1 // pred_check
      _
    $region19: #{tpu_custom_call.1} parent=1 // pred_check_branch
      %54 = sbr.rel (0) target = $region21
    $region20: #{tpu_custom_call.1} parent=1 // pred_region
      %55 = dma.done [#allocation3], 256
    $region21: #{tpu_custom_call.1} parent=1 // pred_fallthru
      _
    // Predicated region
    $region22: #{tpu_custom_call.1} parent=1 // pred_check
      _
    $region23: #{tpu_custom_call.1} parent=1 // pred_check_branch
      %57 = sbr.rel (0) target = $region25
    $region24: #{tpu_custom_call.1} parent=1 // pred_region
      %58 = dma.done [#allocation6], 256
    $region25: #{tpu_custom_call.1} parent=1 // pred_fallthru
      _
    // Predicated region
    $region26: #{tpu_custom_call.1} parent=1 // pred_check
      _
    $region27: #{tpu_custom_call.1} parent=1 // pred_check_branch
      %60 = sbr.rel (0) target = $region29
    $region28: #{tpu_custom_call.1} parent=1 // pred_region
      %61 = dma.done [#allocation6], 3072
    $region29: #{tpu_custom_call.1} parent=1 // pred_fallthru
      _
    %v63 = vld [vmem:[#allocation5] sm:$0xff]
    %v64 = vld [vmem:[#allocation5 + $0x8] sm:$0xff]
    %v65 = vxor.u32 %v63, 2147483648
    %v66 = vxor.u32 %v64, 2147483648
    %v67 = vmul.f32 %v65, 1.442695
    %v68 = vpow.pop %v67
    %v69 = vmul.f32 %v66, 1.442695
    %v70 = vpow.pop %v69
    %v71 = vadd.f32 %v68, 1.0
    %v72 = vadd.f32 %v70, 1.0
    %v73 = vrcp.pop %v71
    %v74 = vmul.f32 1.0, %v73
    %v75 = vrcp.pop %v72
    %v76 = vmul.f32 1.0, %v75
    %v77 = vmul.f32 %v63, %v74
    %v78 = vmul.f32 %v64, %v76
    %v79 = vpack.c.bf16 %v78, %v77
    %v80 = vld [vmem:[#allocation7] sm:$0xff]
    %v81 = vld [vmem:[#allocation7 + $0x8] sm:$0xf]
    %v82 = vld [vmem:[#allocation7 + $0xc] sm:$0xff]
    %v83 = vld [vmem:[#allocation7 + $0x14] sm:$0xf]
    %v84 = vld [vmem:[#allocation7 + $0x18] sm:$0xff]
    %v85 = vld [vmem:[#allocation7 + $0x20] sm:$0xf]
    %v86 = vld [vmem:[#allocation7 + $0x24] sm:$0xff]
    %v87 = vld [vmem:[#allocation7 + $0x2c] sm:$0xf]
    %v88 = vld [vmem:[#allocation7 + $0x30] sm:$0xff]
    %v89 = vld [vmem:[#allocation7 + $0x38] sm:$0xf]
    %v90 = vld [vmem:[#allocation7 + $0x3c] sm:$0xff]
    %v91 = vld [vmem:[#allocation7 + $0x44] sm:$0xf]
    %v92 = vld [vmem:[#allocation7 + $0x48] sm:$0xff]
    %v93 = vld [vmem:[#allocation7 + $0x50] sm:$0xf]
    %v94 = vld [vmem:[#allocation7 + $0x54] sm:$0xff]
    %v95 = vld [vmem:[#allocation7 + $0x5c] sm:$0xf]
    %v96 = vld [vmem:[#allocation7 + $0x60] sm:$0xff]
    %v97 = vld [vmem:[#allocation7 + $0x68] sm:$0xf]
    %v98 = vld [vmem:[#allocation7 + $0x6c] sm:$0xff]
    %v99 = vld [vmem:[#allocation7 + $0x74] sm:$0xf]
    %v100 = vld [vmem:[#allocation7 + $0x78] sm:$0xff]
    %v101 = vld [vmem:[#allocation7 + $0x80] sm:$0xf]
    %v102 = vld [vmem:[#allocation7 + $0x84] sm:$0xff]
    %v103 = vld [vmem:[#allocation7 + $0x8c] sm:$0xf]
    %v104 = vld [vmem:[#allocation7 + $0x90] sm:$0xff]
    %v105 = vld [vmem:[#allocation7 + $0x98] sm:$0xf]
    %v106 = vld [vmem:[#allocation7 + $0x9c] sm:$0xff]
    %v107 = vld [vmem:[#allocation7 + $0xa4] sm:$0xf]
    %v108 = vld [vmem:[#allocation7 + $0xa8] sm:$0xff]
    %v109 = vld [vmem:[#allocation7 + $0xb0] sm:$0xf]
    %v110 = vld [vmem:[#allocation7 + $0xb4] sm:$0xff]
    %v111 = vld [vmem:[#allocation7 + $0xbc] sm:$0xf]
    %v112 = vld [vmem:[%s3] sm:$0x7]
    %v114 = vlaneseq
    %v115 = vshrl.u32 %v114, 7
    %v116 = vsub.s32 0, %v115
    %v117 = vrot.slane %v112, %v116
    %v118 = vlaneseq
    %v119 = vshrl.u32 %v118, 7
    %v120 = vsub.s32 1, %v119
    %v121 = vrot.slane %v112, %v120
    %v122 = vlaneseq
    %v123 = vshrl.u32 %v122, 7
    %v124 = vsub.s32 2, %v123
    %v125 = vrot.slane %v112, %v124
    %v161 = vunpack.c.l.b16 %v80
    %v162 = vunpack.c.h.b16 %v80
    %v163 = vunpack.c.l.b16 %v81
    %v164 = vunpack.c.l.b16 %v82
    %v165 = vunpack.c.h.b16 %v82
    %v166 = vunpack.c.l.b16 %v83
    %v167 = vunpack.c.l.b16 %v84
    %v168 = vunpack.c.h.b16 %v84
    %v169 = vunpack.c.l.b16 %v85
    %v170 = vunpack.c.l.b16 %v86
    %v171 = vunpack.c.h.b16 %v86
    %v172 = vunpack.c.l.b16 %v87
    %v173 = vunpack.c.l.b16 %v88
    %v174 = vunpack.c.h.b16 %v88
    %v175 = vunpack.c.l.b16 %v89
    %v176 = vunpack.c.l.b16 %v90
    %v177 = vunpack.c.h.b16 %v90
    %v178 = vunpack.c.l.b16 %v91
    %v179 = vunpack.c.l.b16 %v92
    %v180 = vunpack.c.h.b16 %v92
    %v181 = vunpack.c.l.b16 %v93
    %v182 = vunpack.c.l.b16 %v94
    %v183 = vunpack.c.h.b16 %v94
    %v184 = vunpack.c.l.b16 %v95
    %v185 = vunpack.c.l.b16 %v96
    %v186 = vunpack.c.h.b16 %v96
    %v187 = vunpack.c.l.b16 %v97
    %v188 = vunpack.c.l.b16 %v98
    %v189 = vunpack.c.h.b16 %v98
    %v190 = vunpack.c.l.b16 %v99
    %v191 = vunpack.c.l.b16 %v100
    %v192 = vunpack.c.h.b16 %v100
    %v193 = vunpack.c.l.b16 %v101
    %v194 = vunpack.c.l.b16 %v102
    %v195 = vunpack.c.h.b16 %v102
    %v196 = vunpack.c.l.b16 %v103
    %v197 = vunpack.c.l.b16 %v104
    %v198 = vunpack.c.h.b16 %v104
    %v199 = vunpack.c.l.b16 %v105
    %v200 = vunpack.c.l.b16 %v106
    %v201 = vunpack.c.h.b16 %v106
    %v202 = vunpack.c.l.b16 %v107
    %v203 = vunpack.c.l.b16 %v108
    %v204 = vunpack.c.h.b16 %v108
    %v205 = vunpack.c.l.b16 %v109
    %v206 = vunpack.c.l.b16 %v110
    %v207 = vunpack.c.h.b16 %v110
    %v208 = vunpack.c.l.b16 %v111
    %v209 = vpack.c.b16 %v164, %v161
    %v210 = vpack.c.b16 %v165, %v162
    %v211 = vpack.c.b16 %v166, %v163
    %v212 = vpack.c.b16 %v170, %v167
    %v213 = vpack.c.b16 %v171, %v168
    %v214 = vpack.c.b16 %v172, %v169
    %v215 = vpack.c.b16 %v176, %v173
    %v216 = vpack.c.b16 %v177, %v174
    %v217 = vpack.c.b16 %v178, %v175
    %v218 = vpack.c.b16 %v182, %v179
    %v219 = vpack.c.b16 %v183, %v180
    %v220 = vpack.c.b16 %v184, %v181
    %v221 = vpack.c.b16 %v188, %v185
    %v222 = vpack.c.b16 %v189, %v186
    %v223 = vpack.c.b16 %v190, %v187
    %v224 = vpack.c.b16 %v194, %v191
    %v225 = vpack.c.b16 %v195, %v192
    %v226 = vpack.c.b16 %v196, %v193
    %v227 = vpack.c.b16 %v200, %v197
    %v228 = vpack.c.b16 %v201, %v198
    %v229 = vpack.c.b16 %v202, %v199
    %v230 = vpack.c.b16 %v206, %v203
    %v231 = vpack.c.b16 %v207, %v204
    %v232 = vpack.c.b16 %v208, %v205
    %257 = vmatprep.subr.bf16.mxu0 %v231
    %258 = vmatpush1.bf16.msra.mxu0 %v230
    %259 = vmatprep.subr.bf16.mxu0 %v228
    %260 = vmatpush1.bf16.msra.mxu0 %v227
    %261 = vmatprep.subr.bf16.mxu0 %v225
    %262 = vmatpush1.bf16.msra.mxu0 %v224
    %263 = vmatprep.subr.bf16.mxu0 %v222
    %264 = vmatpush1.bf16.msra.mxu0 %v221
    %265 = vmatprep.subr.bf16.mxu0 %v219
    %266 = vmatpush1.bf16.msra.mxu0 %v218
    %267 = vmatprep.subr.bf16.mxu0 %v216
    %268 = vmatpush1.bf16.msra.mxu0 %v215
    %269 = vmatprep.subr.bf16.mxu0 %v213
    %270 = vmatpush1.bf16.msra.mxu0 %v212
    %271 = vmatprep.subr.bf16.mxu0 %v210
    %272 = vmatpush1.bf16.msra.mxu0 %v209
    %273 = vmatprep.subr.bf16.mxu0 0
    %274 = vmatpush2.bf16.msra.mxu0 0
    %275 = vmatprep.subr.bf16.mxu0 0
    %276 = vmatpush2.bf16.msra.mxu0 0
    %277 = vmatprep.subr.bf16.mxu0 0
    %278 = vmatpush2.bf16.msra.mxu0 0
    %279 = vmatprep.subr.bf16.mxu0 0
    %280 = vmatpush2.bf16.msra.mxu0 0
    %281 = vmatprep.subr.bf16.mxu0 0
    %282 = vmatpush2.bf16.msra.mxu0 0
    %283 = vmatprep.subr.bf16.mxu0 0
    %284 = vmatpush2.bf16.msra.mxu0 0
    %285 = vmatprep.subr.bf16.mxu0 0
    %286 = vmatpush2.bf16.msra.mxu0 0
    %287 = vmatprep.subr.bf16.mxu0 0
    %288 = vmatpush2.bf16.msra.mxu0 0
    %289 = vmatprep.mubr.bf16.mxu0 0
    %290 = vmatmul.mubr.bf16.gmra.mxu0 %v79
    %v291 = vpop.f32.mrf.mxu0
    %v292 = vadd.f32 %v117, %v291
    %v293 = vpop.f32.mrf.mxu0
    %v294 = vadd.f32 %v121, %v293
    %v295 = vpop.f32.mrf.mxu0
    %v296 = vadd.f32 %v117, %v295
    %v297 = vpop.f32.mrf.mxu0
    %v298 = vadd.f32 %v121, %v297
    %299 = vdwg.mxu0
    %300 = vmatprep.subr.bf16.mxu0 0
    %301 = vmatpush1.bf16.msra.mxu0 %v232
    %302 = vmatprep.subr.bf16.mxu0 0
    %303 = vmatpush1.bf16.msra.mxu0 %v229
    %304 = vmatprep.subr.bf16.mxu0 0
    %305 = vmatpush1.bf16.msra.mxu0 %v226
    %306 = vmatprep.subr.bf16.mxu0 0
    %307 = vmatpush1.bf16.msra.mxu0 %v223
    %308 = vmatprep.subr.bf16.mxu0 0
    %309 = vmatpush1.bf16.msra.mxu0 %v220
    %310 = vmatprep.subr.bf16.mxu0 0
    %311 = vmatpush1.bf16.msra.mxu0 %v217
    %312 = vmatprep.subr.bf16.mxu0 0
    %313 = vmatpush1.bf16.msra.mxu0 %v214
    %314 = vmatprep.subr.bf16.mxu0 0
    %315 = vmatpush1.bf16.msra.mxu0 %v211
    %316 = vmatprep.subr.bf16.mxu0 0
    %317 = vmatpush2.bf16.msra.mxu0 0
    %318 = vmatprep.subr.bf16.mxu0 0
    %319 = vmatpush2.bf16.msra.mxu0 0
    %320 = vmatprep.subr.bf16.mxu0 0
    %321 = vmatpush2.bf16.msra.mxu0 0
    %322 = vmatprep.subr.bf16.mxu0 0
    %323 = vmatpush2.bf16.msra.mxu0 0
    %324 = vmatprep.subr.bf16.mxu0 0
    %325 = vmatpush2.bf16.msra.mxu0 0
    %326 = vmatprep.subr.bf16.mxu0 0
    %327 = vmatpush2.bf16.msra.mxu0 0
    %328 = vmatprep.subr.bf16.mxu0 0
    %329 = vmatpush2.bf16.msra.mxu0 0
    %330 = vmatprep.subr.bf16.mxu0 0
    %331 = vmatpush2.bf16.msra.mxu0 0
    %332 = vmatprep.mubr.bf16.mxu0 0
    %333 = vmatmul.mubr.bf16.gmra.mxu0 %v79
    %v334 = vpop.f32.mrf.mxu0
    %v335 = vadd.f32 %v125, %v334
    %v336 = vpop.f32.mrf.mxu0
    %v337 = vpop.f32.mrf.mxu0
    %v338 = vadd.f32 %v125, %v337
    %v339 = vpop.f32.mrf.mxu0
    %340 = vdwg.mxu0
    %v341 = vld [vmem:[#allocation2] sm:$0xff]
    %v342 = vld [vmem:[#allocation2 + $0x8] sm:$0xff]
    %343 = vadd.xlane.f32.xlu0 %v341
    %v344 = vpop.xlane.xlu0 %343
    %345 = vadd.xlane.f32.xlu0 %v342
    %v346 = vpop.xlane.xlu0 %345
    %v347 = vrcp.pop 128.0
    %v348 = vmul.f32 %v344, %v347
    %v349 = vmul.f32 %v346, %v347
    %v350 = vmul.f32 %v341, %v341
    %v351 = vmul.f32 %v342, %v342
    %352 = vadd.xlane.f32.xlu0 %v350
    %v353 = vpop.xlane.xlu0 %352
    %354 = vadd.xlane.f32.xlu0 %v351
    %v355 = vpop.xlane.xlu0 %354
    %v356 = vmul.f32 %v353, %v347
    %v357 = vmul.f32 %v355, %v347
    %v358 = vmul.f32 %v348, %v348
    %v359 = vmul.f32 %v349, %v349
    %v360 = vsub.f32 %v356, %v358
    %v361 = vsub.f32 %v357, %v359
    %v362 = vmax.f32 %v360, 0.0
    %v363 = vmax.f32 %v361, 0.0
    %v364 = vsub.f32 %v341, %v348
    %v365 = vsub.f32 %v342, %v349
    %v366 = vadd.f32 %v362, 1e-06
    %v367 = vadd.f32 %v363, 1e-06
    %v368 = vrsqrt.pop %v366
    %v369 = vrsqrt.pop %v367
    %v370 = vmul.f32 %v364, %v368
    %v371 = vmul.f32 %v365, %v369
    %v372 = vadd.f32 %v294, 1.0
    %v373 = vadd.f32 %v298, 1.0
    %v374 = vmul.f32 %v370, %v372
    %v375 = vmul.f32 %v371, %v373
    %v376 = vadd.f32 %v374, %v292
    %v377 = vadd.f32 %v375, %v296
    %378 = vst [vmem:[#allocation8] sm:$0xff] %v376
    %379 = vst [vmem:[#allocation8 + $0x8] sm:$0xff] %v377
    %380 = vst [vmem:[#allocation9] sm:$0xff] %v335
    %381 = vst [vmem:[#allocation9 + $0x8] sm:$0xff] %v338
    // Predicated region
    $region30: #{tpu_custom_call.1} parent=1 // pred_check
      _
    $region31: #{tpu_custom_call.1} parent=1 // pred_check_branch
      %383 = sbr.rel (0) target = $region33
    $region32: #{tpu_custom_call.1} parent=1 // pred_region
      %s385 = ssub.s32 256, 256
      %386 = vsyncadd [#allocation4], %s385
      %s387 = sshll.u32 [#allocation8], 4
      %s388 = int_to_ptr.vmem [resolvable:$true] %s387
      %393 = dma.vmem_to_hbm [thread:$0]  %s388, 256, %s4, [#allocation4], 128, 128, 8
    $region33: #{tpu_custom_call.1} parent=1 // pred_fallthru
      _
    // Predicated region
    $region34: #{tpu_custom_call.1} parent=1 // pred_check
      _
    $region35: #{tpu_custom_call.1} parent=1 // pred_check_branch
      %395 = sbr.rel (0) target = $region37
    $region36: #{tpu_custom_call.1} parent=1 // pred_region
      %s397 = ssub.s32 256, 256
      %398 = vsyncadd [#allocation10], %s397
      %s399 = sshll.u32 [#allocation9], 4
      %s400 = int_to_ptr.vmem [resolvable:$true] %s399
      %405 = dma.vmem_to_hbm [thread:$0]  %s400, 256, %s5, [#allocation10], 128, 128, 8
    $region37: #{tpu_custom_call.1} parent=1 // pred_fallthru
      _
    // Predicated region
    $region38: #{tpu_custom_call.1} parent=1 // pred_check
      _
    $region39: #{tpu_custom_call.1} parent=1 // pred_check_branch
      %407 = sbr.rel (0) target = $region41
    $region40: #{tpu_custom_call.1} parent=1 // pred_region
      %408 = dma.done [#allocation4], 256
    $region41: #{tpu_custom_call.1} parent=1 // pred_fallthru
      _
    // Predicated region
    $region42: #{tpu_custom_call.1} parent=1 // pred_check
      _
    $region43: #{tpu_custom_call.1} parent=1 // pred_check_branch
      %410 = sbr.rel (0) target = $region45
    $region44: #{tpu_custom_call.1} parent=1 // pred_region
      %411 = dma.done [#allocation10], 256
    $region45: #{tpu_custom_call.1} parent=1 // pred_fallthru
      _
    %412 = vsyncpa [#allocation3], 1
    %413 = vsyncpa [#allocation6], 1
    %414 = vsyncpa [#allocation4], 1
    %415 = vsyncpa [#allocation10], 1

</llo_original>
